<compile_context>
chip_gen: v5e
topology: v5e:2x2
jax: 0.10.0
libtpu: 0.0.40
codegen_flags: <defaults>
</compile_context>

<pallas_src>
import math
import functools

import jax
import jax.numpy as jnp
from jax import lax
from jax.experimental import pallas as pl
from jax.experimental.pallas import tpu as pltpu


# ----------------------------------------------------------------------------
# Activations (match the PyTorch module's supported set; VPU/EUP in-kernel)
# ----------------------------------------------------------------------------
_ACTIVATIONS = {
    "relu":       lambda z: jnp.maximum(z, 0.0),
    "tanh":       jnp.tanh,
    "sigmoid":    jax.nn.sigmoid,
    "leaky_relu": lambda z: jnp.where(z >= 0, z, 0.01 * z),
    "elu":        lambda z: jnp.where(z >= 0, z, jnp.expm1(z)),
    "swish":      lambda z: z * jax.nn.sigmoid(z),
}


# ----------------------------------------------------------------------------
# VMEM budgeting (per-generation): v5e/v6e 128 MiB, v7x 64 MiB per TC.
# Fall back to the most constrained generation if the query is unavailable.
# ----------------------------------------------------------------------------
def _vmem_budget():
    try:
        cap = int(pltpu.get_tpu_info().vmem_capacity_bytes)
    except Exception:
        cap = 64 * 1024 * 1024                       # v7x per-TC (conservative)
    budget = max(16 << 20, min(int(cap * 0.40), 56 << 20))   # working-set target
    limit = max(32 << 20, min(int(cap * 0.75), 96 << 20))    # requested scoped limit
    return budget, limit


_VMEM_BUDGET_BYTES, _VMEM_LIMIT_BYTES = _vmem_budget()


def _round_up(n, m):
    return ((n + m - 1) // m) * m


def _pick_batch_tile(B, d_in, hidden, with_act_out, mm_bytes, h_bytes):
    """Pick (TB, B_pad).

    VMEM accounting:
      * constant operands (w1 in matmul dtype, b1/w2 rows in f32) counted once
        -- they are single-buffered via pipeline_mode=pl.Buffered(1);
      * per-batch-row streams (x in, lane-dense out row, optional h out)
        counted twice (double-buffered) plus one f32 in-kernel h temp.
    """
    sub = 16 if mm_bytes == 2 else 8                # bf16 packs 16 sublanes/vreg
    const_bytes = d_in * hidden * mm_bytes + 2 * hidden * 4
    per_row = (2 * (d_in * mm_bytes + 4 + (hidden * h_bytes if with_act_out else 0))
               + hidden * 4)
    avail = max(_VMEM_BUDGET_BYTES - const_bytes, per_row * sub)
    cap = avail // per_row

    B_sub = _round_up(B, sub)
    if B_sub <= min(cap, 256):
        # Single tile: block == full array, any sublane-aligned TB is legal.
        return B_sub, B_sub

    # Multi-tile: TB must be a multiple of 128 (lane dim of the (1, TB) output
    # block) and small enough that the grid has >= 2 steps (v7x megacore).
    tb = min(cap, 1024, max(_round_up(B_sub, 128) // 2, 128))
    tb = max(128, (tb // 128) * 128)
    return tb, _round_up(B, tb)


# ----------------------------------------------------------------------------
# Params (hoisted, one-time layout conversion)
# ----------------------------------------------------------------------------
def prepare_params(w1, b1, w2, b2, use_bf16=False):
    """PyTorch (out,in) -> (in,out); biases to row / 1-D scalar.  The matmul
    dtype is carried by w1_t.dtype so forward() can never disagree with it."""
    mm_dtype = jnp.bfloat16 if use_bf16 else jnp.float32
    w1_t = jnp.asarray(w1, jnp.float32).T.astype(mm_dtype)    # (d_in, hidden)
    b1_r = jnp.asarray(b1, jnp.float32).reshape(1, -1)        # (1, hidden) f32
    w2_r = jnp.asarray(w2, jnp.float32).reshape(1, -1)        # (1, hidden) f32
    b2_s = jnp.asarray(b2, jnp.float32).reshape(1)            # (1,) SMEM scalar
    return w1_t, b1_r, w2_r, b2_s


# ----------------------------------------------------------------------------
# Kernels
# ----------------------------------------------------------------------------
def _make_kernel(act_fn, with_activation_out):
    def _compute(x_ref, w1_ref, b1_ref, w2_ref, b2_ref):
        # fc1 on the MXU, f32 accumulation regardless of x/w1 dtype.
        pre = jnp.dot(x_ref[...], w1_ref[...],
                      preferred_element_type=jnp.float32) + b1_ref[...]
        h = act_fn(pre)                                        # (TB, H) f32
        # fc2 as (1,H) x (TB,H)^T on the MXU -> lane-dense (1, TB) row.
        out_row = lax.dot_general(
            w2_ref[...], h,
            dimension_numbers=(((1,), (1,)), ((), ())),
            preferred_element_type=jnp.float32) + b2_ref[0]
        return out_row, h

    if with_activation_out:
        def kernel(x_ref, w1_ref, b1_ref, w2_ref, b2_ref, out_ref, h_ref):
            out_row, h = _compute(x_ref, w1_ref, b1_ref, w2_ref, b2_ref)
            out_ref[...] = out_row.astype(out_ref.dtype)
            h_ref[...] = h.astype(h_ref.dtype)
    else:
        def kernel(x_ref, w1_ref, b1_ref, w2_ref, b2_ref, out_ref):
            out_row, _ = _compute(x_ref, w1_ref, b1_ref, w2_ref, b2_ref)
            out_ref[...] = out_row.astype(out_ref.dtype)

    return kernel


# ----------------------------------------------------------------------------
# Wrapper
# ----------------------------------------------------------------------------
@functools.partial(jax.jit,
                   static_argnames=("activation", "return_activation", "h_dtype"))
def learning_network_forward(x, params, *, activation="relu",
                             return_activation=False, h_dtype=jnp.float32):
    """x: (B, input_size).  params: output of prepare_params()."""
    w1_t, b1_r, w2_r, b2_s = params
    B, d_in = x.shape
    hidden = w1_t.shape[1]
    act_fn = _ACTIVATIONS[activation]

    mm_dtype = w1_t.dtype                      # matmul dtype defined by params
    x = x.astype(mm_dtype)
    mm_bytes = jnp.dtype(mm_dtype).itemsize
    h_bytes = jnp.dtype(h_dtype).itemsize

    TB, B_pad = _pick_batch_tile(B, d_in, hidden, return_activation,
                                 mm_bytes, h_bytes)
    if B_pad != B:
        x = jnp.pad(x, ((0, B_pad - B), (0, 0)))
    n_tiles = B_pad // TB

    const = dict(pipeline_mode=pl.Buffered(1))   # never re-fetched across steps
    in_specs = [
        pl.BlockSpec((TB, d_in),     lambda i: (i, 0)),            # x (streamed)
        pl.BlockSpec((d_in, hidden), lambda i: (0, 0), **const),   # w1 resident
        pl.BlockSpec((1, hidden),    lambda i: (0, 0), **const),   # b1 resident
        pl.BlockSpec((1, hidden),    lambda i: (0, 0), **const),   # w2 row resident
        pl.BlockSpec(memory_space=pltpu.MemorySpace.SMEM),         # b2 scalar
    ]

    out_spec_o = pl.BlockSpec((1, TB), lambda i: (0, i))   # lane-dense out slab
    if return_activation:
        out_shape = (jax.ShapeDtypeStruct((1, B_pad), jnp.float32),
                     jax.ShapeDtypeStruct((B_pad, hidden), h_dtype))
        out_specs = [out_spec_o,
                     pl.BlockSpec((TB, hidden), lambda i: (i, 0))]
    else:
        out_shape = jax.ShapeDtypeStruct((1, B_pad), jnp.float32)
        out_specs = out_spec_o

    result = pl.pallas_call(
        _make_kernel(act_fn, return_activation),
        out_shape=out_shape,
        grid_spec=pl.GridSpec(
            grid=(n_tiles,),
            in_specs=in_specs,
            out_specs=out_specs,
        ),
        compiler_params=pltpu.CompilerParams(
            dimension_semantics=("parallel",),   # v7x: shard batch over 2 TCs
            vmem_limit_bytes=_VMEM_LIMIT_BYTES,
        ),
    )(x, w1_t, b1_r, w2_r, b2_s)

    if return_activation:
        out_slab, h = result
        out = out_slab.reshape(-1)[:B].reshape(B, 1)
        return out, h[:B]
    return result.reshape(-1)[:B].reshape(B, 1)


# ----------------------------------------------------------------------------
# Deterministic test
# ----------------------------------------------------------------------------
def _kaiming_uniform(key, shape, fan_in, gain):
    # matches torch.nn.init.kaiming_uniform_ (uniform in [-bound, bound])
    bound = gain * math.sqrt(3.0 / fan_in)
    return jax.random.uniform(key, shape, jnp.float32, -bound, bound)


if __name__ == "__main__":
    input_size, hidden_size = 16, 32
    key = jax.random.PRNGKey(0)
    k_x, k_x2, k_w1, k_w2 = jax.random.split(key, 4)

    # Parameter init mirroring the module's __init__ ('relu' path).
    w1 = _kaiming_uniform(k_w1, (hidden_size, input_size), fan_in=input_size,
                          gain=math.sqrt(2.0))
    w2 = _kaiming_uniform(k_w2, (1, hidden_size), fan_in=hidden_size, gain=1.0)
    b1 = jnp.zeros((hidden_size,), jnp.float32)
    b2 = jnp.zeros((1,), jnp.float32)

    params = prepare_params(w1, b1, w2, b2)        # f32 (parity with PyTorch)

    def ref_fwd(xv, act):
        z = xv @ w1.T + b1
        hv = _ACTIVATIONS[act](z)
        return hv @ w2.T + b2, hv

    # --- small batch (single tile), both output paths, relu ---
    x = jax.random.normal(k_x, (8, input_size), jnp.float32)
    out_ref, h_ref = ref_fwd(x, "relu")

    out_only = jax.block_until_ready(
        learning_network_forward(x, params, activation="relu"))
    out, h = jax.block_until_ready(
        learning_network_forward(x, params, activation="relu",
                                 return_activation=True))
    assert out_only.shape == (8, 1), "output shape mismatch"
    assert jnp.allclose(out_only, out_ref, atol=1e-4), "output (no-act) mismatch"
    assert jnp.allclose(out, out_ref, atol=1e-4), "output mismatch"
    assert jnp.allclose(h, h_ref, atol=1e-4), "activation mismatch"

    # --- larger batch (multi-tile grid, lane-dense out slab), tanh ---
    xl = jax.random.normal(k_x2, (300, input_size), jnp.float32)
    out_ref_l, _ = ref_fwd(xl, "tanh")
    out_l = jax.block_until_ready(
        learning_network_forward(xl, params, activation="tanh"))
    assert out_l.shape == (300, 1), "tiled output shape mismatch"
    assert jnp.allclose(out_l, out_ref_l, atol=1e-4), "tiled output mismatch"

    # --- bf16 matmul-input path (v6e/v7x MXU rate), relaxed tolerance ---
    params_bf16 = prepare_params(w1, b1, w2, b2, use_bf16=True)
    out_bf = jax.block_until_ready(
        learning_network_forward(x, params_bf16, activation="relu"))
    assert jnp.allclose(out_bf, out_ref, atol=5e-2, rtol=5e-2), "bf16 mismatch"

    print("KERNEL_OK")
</pallas_src>

<mosaic_0001>
module attributes {stable_mosaic.version = 11 : i64} {
  func.func @kernel(%arg0: i32, %arg1: memref<8x16xf32, #tpu.memory_space<vmem>>, %arg2: memref<16x32xf32, #tpu.memory_space<vmem>>, %arg3: memref<1x32xf32, #tpu.memory_space<vmem>>, %arg4: memref<1x32xf32, #tpu.memory_space<vmem>>, %arg5: memref<1xf32, #tpu.memory_space<smem>>, %arg6: memref<1x8xf32, #tpu.memory_space<vmem>>) attributes {dimension_semantics = [#tpu.dimension_semantics<parallel>], iteration_bounds = array<i64: 1>, scalar_prefetch = 0 : i64, scratch_operands = 0 : i64, tpu.core_type = #tpu.core_type<tc>, window_params = [{transform_indices = @transform_0, window_bounds = array<i64: 8, 16>}, {pipeline_mode = #tpu.pipeline_mode<synchronous>, transform_indices = @transform_1, window_bounds = array<i64: 16, 32>}, {pipeline_mode = #tpu.pipeline_mode<synchronous>, transform_indices = @transform_2, window_bounds = array<i64: 1, 32>}, {pipeline_mode = #tpu.pipeline_mode<synchronous>, transform_indices = @transform_3, window_bounds = array<i64: 1, 32>}, {transform_indices = @transform_4, window_bounds = array<i64: 1>}, {transform_indices = @transform_5, window_bounds = array<i64: 1, 8>}]} {
    %c0 = arith.constant 0 : index
    %c0_0 = arith.constant 0 : index
    %0 = vector.load %arg1[%c0, %c0_0] : memref<8x16xf32, #tpu.memory_space<vmem>>, vector<8x16xf32>
    %c0_1 = arith.constant 0 : index
    %c0_2 = arith.constant 0 : index
    %1 = vector.load %arg2[%c0_1, %c0_2] : memref<16x32xf32, #tpu.memory_space<vmem>>, vector<16x32xf32>
    %cst = arith.constant dense<0.000000e+00> : vector<8x32xf32>
    %2 = tpu.matmul %0, %1, %cst {dimension_numbers = #tpu.dot_dimension_numbers<[1], [0], [0], [1], [0, 0, 1, 1], [], []>} : vector<8x16xf32>, vector<16x32xf32>, vector<8x32xf32> -> vector<8x32xf32>
    %c0_3 = arith.constant 0 : index
    %c0_4 = arith.constant 0 : index
    %3 = vector.load %arg3[%c0_3, %c0_4] : memref<1x32xf32, #tpu.memory_space<vmem>>, vector<1x32xf32>
    %4 = vector.broadcast %3 : vector<1x32xf32> to vector<8x32xf32>
    %5 = arith.addf %2, %4 : vector<8x32xf32>
    %cst_5 = arith.constant 0.000000e+00 : f32
    %6 = vector.broadcast %cst_5 : f32 to vector<8x32xf32>
    %7 = arith.maximumf %5, %6 : vector<8x32xf32>
    %c0_6 = arith.constant 0 : index
    %c0_7 = arith.constant 0 : index
    %8 = vector.load %arg4[%c0_6, %c0_7] : memref<1x32xf32, #tpu.memory_space<vmem>>, vector<1x32xf32>
    %cst_8 = arith.constant dense<0.000000e+00> : vector<1x8xf32>
    %9 = tpu.matmul %8, %7, %cst_8 {dimension_numbers = #tpu.dot_dimension_numbers<[1], [1], [0], [0], [0, 0, 1, 0], [], []>} : vector<1x32xf32>, vector<8x32xf32>, vector<1x8xf32> -> vector<1x8xf32>
    %c0_9 = arith.constant 0 : index
    %10 = memref.load %arg5[%c0_9] : memref<1xf32, #tpu.memory_space<smem>>
    %11 = vector.broadcast %10 : f32 to vector<1x8xf32>
    %12 = arith.addf %9, %11 : vector<1x8xf32>
    %c0_10 = arith.constant 0 : index
    %c0_11 = arith.constant 0 : index
    %13 = vector.load %arg6[%c0_10, %c0_11] : memref<1x8xf32, #tpu.memory_space<vmem>>, vector<1x8xf32>
    tpu.vector_store %arg6[%c0_10, %c0_11], %12 {strides = array<i32>} : memref<1x8xf32, #tpu.memory_space<vmem>>, vector<1x8xf32>,
    return
  }
  func.func @transform_0(%arg0: i32) -> (i32, i32) {
    %c0_i32 = arith.constant 0 : i32
    %c0_i32_0 = arith.constant 0 : i32
    return %arg0, %c0_i32 : i32, i32
  }
  func.func @transform_1(%arg0: i32) -> (i32, i32) {
    %c0_i32 = arith.constant 0 : i32
    %c0_i32_0 = arith.constant 0 : i32
    %c0_i32_1 = arith.constant 0 : i32
    return %c0_i32, %c0_i32_0 : i32, i32
  }
  func.func @transform_2(%arg0: i32) -> (i32, i32) {
    %c0_i32 = arith.constant 0 : i32
    %c0_i32_0 = arith.constant 0 : i32
    %c0_i32_1 = arith.constant 0 : i32
    return %c0_i32, %c0_i32_0 : i32, i32
  }
  func.func @transform_3(%arg0: i32) -> (i32, i32) {
    %c0_i32 = arith.constant 0 : i32
    %c0_i32_0 = arith.constant 0 : i32
    %c0_i32_1 = arith.constant 0 : i32
    return %c0_i32, %c0_i32_0 : i32, i32
  }
  func.func @transform_4(%arg0: i32) -> i32 {
    %c0_i32 = arith.constant 0 : i32
    %c0_i32_0 = arith.constant 0 : i32
    return %c0_i32 : i32
  }
  func.func @transform_5(%arg0: i32) -> (i32, i32) {
    %c0_i32 = arith.constant 0 : i32
    %c0_i32_0 = arith.constant 0 : i32
    return %c0_i32, %arg0 : i32, i32
  }
}

</mosaic_0001>

<llo_original>
// kernel: learning_network_forward.1
$region0: #{learning_network_forward.1}
  #allocation0 [shape = 'u32[]', space=smem, size = 0x4, offset = 0x4, fixed_abs, tag = 'smem constant byte address 0x4 - core index']
  #allocation1 [shape = 'u32[72,128]{1,0:T(1,128)}', space=vmem, size = 0x9000, scoped, tag = 'internal scratch']
  #allocation2 [shape = 'f32[1]{0:T(128)S(6)}', space=smem, size = 0x200, scoped, tag = 'scoped memory for learning_network_forward.1']
  %s0 = inlined_call_operand.hbm [shape: f32[8,16], index: 0, kind: input, shape index: {}]
  %s1 = inlined_call_operand.hbm [shape: f32[16,32], index: 1, kind: input, shape index: {}]
  %s2 = inlined_call_operand.vmem [shape: f32[1,32], index: 2, kind: input, shape index: {}]
  %s3 = inlined_call_operand.vmem [shape: f32[1,32], index: 3, kind: input, shape index: {}]
  %s4 = inlined_call_operand.<no memory space> [shape: f32[1], index: 4, kind: input, shape index: {}]
  %s5 = inlined_call_operand.hbm [shape: f32[1,8], index: 5, kind: output, shape index: {}]
  %s6 = sld [smem:[#allocation0]]
  $region38: #{learning_network_forward.1} parent=0
    _
  %s8 = ssub.s32 1, %s6
  %s9 = scalar_select 0, %s8, %s6
  %10 = sst [smem:[#allocation2]] %s4
  $region1: #{learning_network_forward.1} parent=0
    #allocation3 [shape = 'u8[4096]{0}', space=vmem, size = 0x1000, scoped, tag = 'input window, operand 0, single buffered']
    #allocation4 [shape = 's32[1]{0}', space=sflag, size = 0x4, scoped, tag = 'scoped memory for learning_network_forward.1']
    #allocation5 [shape = 's32[1]{0}', space=sflag, size = 0x4, scoped, tag = 'scoped memory for learning_network_forward.1']
    #allocation6 [shape = 'u8[8192]{0}', space=vmem, size = 0x2000, scoped, tag = 'input window, operand 1, single buffered']
    #allocation7 [shape = 's32[1]{0}', space=sflag, size = 0x4, scoped, tag = 'scoped memory for learning_network_forward.1']
    #allocation8 [shape = 'u8[512]{0}', space=vmem, size = 0x400, scoped, tag = 'output window, operand 0, single buffered']
    %11 = vsyncpa [#allocation4], 0
    %12 = vsyncpa [#allocation7], 0
    %13 = vsyncpa [#allocation5], 0
    // Predicated region
    $region2: #{learning_network_forward.1} parent=1 // pred_check
      _
    $region3: #{learning_network_forward.1} parent=1 // pred_check_branch
      %15 = sbr.rel (0) target = $region5
    $region4: #{learning_network_forward.1} parent=1 // pred_region
      %17 = vsyncadd [#allocation4], 0
      %s19 = sshll.u32 %s0, 4
      %s20 = int_to_ptr.hbm [resolvable:$true] %s19
      %s21 = sshll.u32 [#allocation3], 4
      %s22 = int_to_ptr.vmem [resolvable:$true] %s21
      %24 = dma.hbm_to_vmem [thread:$0]  %s20, 128, %s22, [#allocation4]
    $region5: #{learning_network_forward.1} parent=1 // pred_fallthru
      _
    // Predicated region
    $region6: #{learning_network_forward.1} parent=1 // pred_check
      _
    $region7: #{learning_network_forward.1} parent=1 // pred_check_branch
      %26 = sbr.rel (0) target = $region9
    $region8: #{learning_network_forward.1} parent=1 // pred_region
      %28 = vsyncadd [#allocation7], 0
      %s29 = sshll.u32 %s1, 4
      %s30 = int_to_ptr.hbm [resolvable:$true] %s29
      %s31 = sshll.u32 [#allocation6], 4
      %s32 = int_to_ptr.vmem [resolvable:$true] %s31
      %37 = dma.hbm_to_vmem [thread:$0]  %s30, 256, %s32, [#allocation7], 128, 128, 8
    $region9: #{learning_network_forward.1} parent=1 // pred_fallthru
      _
    // Predicated region
    $region10: #{learning_network_forward.1} parent=1 // pred_check
      _
    $region11: #{learning_network_forward.1} parent=1 // pred_check_branch
      %39 = sbr.rel (0) target = $region13
    $region12: #{learning_network_forward.1} parent=1 // pred_region
      _
    $region13: #{learning_network_forward.1} parent=1 // pred_fallthru
      _
    // Predicated region
    $region14: #{learning_network_forward.1} parent=1 // pred_check
      _
    $region15: #{learning_network_forward.1} parent=1 // pred_check_branch
      %41 = sbr.rel (0) target = $region17
    $region16: #{learning_network_forward.1} parent=1 // pred_region
      _
    $region17: #{learning_network_forward.1} parent=1 // pred_fallthru
      _
    // Predicated region
    $region18: #{learning_network_forward.1} parent=1 // pred_check
      _
    $region19: #{learning_network_forward.1} parent=1 // pred_check_branch
      %43 = sbr.rel (0) target = $region21
    $region20: #{learning_network_forward.1} parent=1 // pred_region
      _
    $region21: #{learning_network_forward.1} parent=1 // pred_fallthru
      _
    // Predicated region
    $region22: #{learning_network_forward.1} parent=1 // pred_check
      _
    $region23: #{learning_network_forward.1} parent=1 // pred_check_branch
      %45 = sbr.rel (0) target = $region25
    $region24: #{learning_network_forward.1} parent=1 // pred_region
      %47 = dma.done [#allocation4], 128
    $region25: #{learning_network_forward.1} parent=1 // pred_fallthru
      _
    // Predicated region
    $region26: #{learning_network_forward.1} parent=1 // pred_check
      _
    $region27: #{learning_network_forward.1} parent=1 // pred_check_branch
      %49 = sbr.rel (0) target = $region29
    $region28: #{learning_network_forward.1} parent=1 // pred_region
      %51 = dma.done [#allocation7], 256
    $region29: #{learning_network_forward.1} parent=1 // pred_fallthru
      _
    %v52 = vld [vmem:[#allocation3] sm:$0xff]
    %v53 = vld [vmem:[#allocation6] sm:$0xff]
    %v54 = vld [vmem:[#allocation6 + $0x8] sm:$0xff]
    %v55 = vld [vmem:[%s2] sm:$0x1]
    %v57 = vperm.slane %v55, 0
    %vm59 = vcmask 130048
    %v61 = vsel %vm59, %v52, 0
    %63 = vmatpush.msra.mxu0 0.0
    %64 = vmatpush.msra.mxu0 0.0
    %65 = vmatpush.msra.mxu0 0.0
    %66 = vmatpush.msra.mxu0 0.0
    %67 = vmatpush.msra.mxu0 0.0
    %68 = vmatpush.msra.mxu0 0.0
    %69 = vmatpush.msra.mxu0 0.0
    %70 = vmatpush.msra.mxu0 0.0
    %71 = vmatpush.msra.mxu0 0.0
    %72 = vmatpush.msra.mxu0 0.0
    %73 = vmatpush.msra.mxu0 0.0
    %74 = vmatpush.msra.mxu0 0.0
    %75 = vmatpush.msra.mxu0 0.0
    %76 = vmatpush.msra.mxu0 0.0
    %77 = vmatpush.msra.mxu0 %v54
    %78 = vmatpush.msra.mxu0 %v53
    %79 = vmatmul.f32.gmra.mxu0 %v61
    %v80 = vpop.f32.mrf.mxu0
    %v81 = vadd.f32 %v57, %v80
    %82 = vdwg.mxu0
    %v83 = vmax.f32 %v81, 0.0
    %v84 = vld [vmem:[%s3] sm:$0x1]
    %s85 = sld [smem:[#allocation2]]
    %v86 = vstv %s85
    %vm87 = vcmask 261120
    %v89 = vsel %vm87, %v84, 0
    %v92 = vsel %vm87, %v83, 0
    %94 = vmatpush.xpose.msra.mxu0 0.0
    %95 = vmatpush.xpose.msra.mxu0 0.0
    %96 = vmatpush.xpose.msra.mxu0 0.0
    %97 = vmatpush.xpose.msra.mxu0 0.0
    %98 = vmatpush.xpose.msra.mxu0 0.0
    %99 = vmatpush.xpose.msra.mxu0 0.0
    %100 = vmatpush.xpose.msra.mxu0 0.0
    %101 = vmatpush.xpose.msra.mxu0 0.0
    %102 = vmatpush.xpose.msra.mxu0 0.0
    %103 = vmatpush.xpose.msra.mxu0 0.0
    %104 = vmatpush.xpose.msra.mxu0 0.0
    %105 = vmatpush.xpose.msra.mxu0 0.0
    %106 = vmatpush.xpose.msra.mxu0 0.0
    %107 = vmatpush.xpose.msra.mxu0 0.0
    %108 = vmatpush.xpose.msra.mxu0 0.0
    %109 = vmatpush.xpose.msra.mxu0 %v92
    %110 = vmatmul.f32.gmra.mxu0 %v89
    %v111 = vpop.f32.mrf.mxu0
    %v112 = vadd.f32 %v86, %v111
    %113 = vdwg.mxu0
    %vm114 = vcmask 57344
    %115 = vst.msk [vmem:[#allocation8] sm:$0x1] %vm114, %v112
    // Predicated region
    $region30: #{learning_network_forward.1} parent=1 // pred_check
      _
    $region31: #{learning_network_forward.1} parent=1 // pred_check_branch
      %117 = sbr.rel (0) target = $region33
    $region32: #{learning_network_forward.1} parent=1 // pred_region
      %119 = vsyncadd [#allocation5], 0
      %s121 = sshll.u32 [#allocation8], 4
      %s122 = int_to_ptr.vmem [resolvable:$true] %s121
      %s123 = sshll.u32 %s5, 4
      %s124 = int_to_ptr.hbm [resolvable:$true] %s123
      %126 = dma.vmem_to_hbm [thread:$0]  %s122, 16, %s124, [#allocation5]
    $region33: #{learning_network_forward.1} parent=1 // pred_fallthru
      _
    // Predicated region
    $region34: #{learning_network_forward.1} parent=1 // pred_check
      _
    $region35: #{learning_network_forward.1} parent=1 // pred_check_branch
      %128 = sbr.rel (0) target = $region37
    $region36: #{learning_network_forward.1} parent=1 // pred_region
      %130 = dma.done [#allocation5], 16
    $region37: #{learning_network_forward.1} parent=1 // pred_fallthru
      _
    %131 = vsyncpa [#allocation4], 1
    %132 = vsyncpa [#allocation7], 1
    %133 = vsyncpa [#allocation5], 1

</llo_original>
